<compile_context>
chip_gen: v5e
topology: v5e:2x2
jax: 0.10.0
libtpu: 0.0.40
codegen_flags: <defaults>
</compile_context>

<pallas_src>
import jax
import jax.numpy as jnp
from jax.experimental import pallas as pl
from jax.experimental.pallas import tpu as pltpu


def _spatial_dropout_kernel(x_ref, noise_ref, o_ref):
    """x_ref / o_ref block: (bB, TS, Hp); noise_ref block: (bB, 1, Hp).

    Native-dtype multiply (no f32 round trip: the kernel is HBM-bound); the
    (bB, 1, Hp) mask broadcasts across the TS (seq) axis.
    """
    o_ref[...] = x_ref[...] * noise_ref[...]


def _vmem_capacity_bytes():
    try:
        return int(pltpu.get_tpu_info().vmem_capacity_bytes)
    except Exception:
        return 64 << 20  # conservative default (v7x per-TC VMEM)


def _round_ts(S, ts, sub):
    """Round ts down to a divisor of S that is a multiple of the sublane
    packing (avoids a ragged, masked last s-block); fall back to a plain
    multiple of `sub` if no such divisor exists."""
    ts = min(ts, S)
    if ts >= S:
        return S
    cand = max(sub, (ts // sub) * sub)
    c = cand
    while c >= sub:
        if S % c == 0:
            return c
        c -= sub
    return cand


def _choose_tiles(B, S, H, itemsize, target_bytes):
    """Pick (bB, TS) so one block is ~target_bytes, layout-legal, and the
    grid has >= 2 steps (megacore sharding on v7x)."""
    row_bytes = H * itemsize
    sub = max(1, 32 // itemsize)  # sublane packing: 8 (f32), 16 (bf16), 32 (i8)
    if S * row_bytes <= target_bytes:
        # Whole seq axis fits: coalesce several batch elements per grid step
        # so the ~0.35 us per-step overhead amortizes over a bigger DMA.
        ts = S
        bb = max(1, min(B, target_bytes // max(1, S * row_bytes)))
    else:
        ts = _round_ts(S, max(sub, target_bytes // row_bytes), sub)
        bb = 1

    def grid_steps(bb_, ts_):
        return pl.cdiv(B, bb_) * pl.cdiv(S, ts_)

    # Ensure at least 2 grid steps so dimension_semantics=("parallel",...)
    # actually has work to shard across v7x's two TensorCores.
    while grid_steps(bb, ts) < 2:
        if bb > 1:
            bb = pl.cdiv(bb, 2)
        elif ts > sub and S > sub:
            new_ts = _round_ts(S, max(sub, ts // 2), sub)
            if new_ts >= ts:
                break
            ts = new_ts
        else:
            break
    return int(bb), int(ts)


def spatial_dropout(x, drop_prob, seed, *, training=True,
                    target_tile_bytes=None, force_pallas=False):
    """Pallas implementation of Spatial_Dropout.forward.

    NOTE: `drop_prob` and `seed` must be concrete Python values (not traced);
    the p == 0 / p == 1 branches and PRNGKey construction happen in Python.
    """
    if (not training) or drop_prob == 0:
        return x
    if drop_prob == 1:
        # noise.fill_(0) path
        return jnp.zeros_like(x)

    assert x.ndim == 3, "kernel handles 3-D (B, S, H) inputs"
    B, S, H = x.shape
    # PyTorch expand_as(noise of shape (B, 1, size(1))) requires size(1)==size(-1)
    assert S == H, "Spatial_Dropout requires input.size(1) == input.size(-1)"

    keep_prob = 1.0 - float(drop_prob)
    # One Bernoulli mask per (batch, hidden) element, shared across the seq
    # axis; pre-scaled by 1/(1-p) and cast to x.dtype so the kernel performs a
    # single native-dtype multiply.
    key = jax.random.PRNGKey(int(seed))
    keep = jax.random.bernoulli(key, keep_prob, (B, 1, H))
    noise = keep.astype(x.dtype) * jnp.asarray(1.0 / keep_prob, dtype=x.dtype)

    itemsize = jnp.dtype(x.dtype).itemsize
    total_bytes = B * S * H * itemsize

    # Fast path: for tiny inputs the pallas_call dispatch + pipeline prologue
    # dominates and plain XLA fuses the broadcast multiply into neighbours.
    if (not force_pallas) and total_bytes < (2 << 20):
        return x * noise

    # Generation-aware tile / VMEM budget.
    vmem_cap = _vmem_capacity_bytes()
    big_vmem = vmem_cap >= (100 << 20)            # v5e / v6e (128 MiB)
    vmem_budget = (40 << 20) if big_vmem else (32 << 20)
    if target_tile_bytes is None:
        target_tile_bytes = (8 << 20) if big_vmem else (4 << 20)
    # Keep in+out double-buffering (~4 * tile) safely inside the budget even
    # if a caller passes an aggressive target_tile_bytes.
    target_tile_bytes = int(min(target_tile_bytes,
                                max(1 << 20, (vmem_budget - (4 << 20)) // 4)))

    # Lane-dense stores: pad H to a multiple of 128 (masked vst.msk partial
    # stores are the biggest measured lever for store-bound kernels).
    Hp = ((H + 127) // 128) * 128
    if Hp != H:
        x_k = jnp.pad(x, ((0, 0), (0, 0), (0, Hp - H)))
        noise_k = jnp.pad(noise, ((0, 0), (0, 0), (0, Hp - H)))
    else:
        x_k, noise_k = x, noise

    bB, TS = _choose_tiles(B, S, Hp, itemsize, target_tile_bytes)
    grid = (pl.cdiv(B, bB), pl.cdiv(S, TS))

    # in + out tiles, double-buffered, plus the small mask buffers + headroom.
    tile_bytes = bB * TS * Hp * itemsize
    mask_bytes = bB * Hp * itemsize
    vmem_limit = int(min(vmem_budget,
                         max(16 << 20, 4 * tile_bytes + 4 * mask_bytes + (2 << 20))))

    cost = pl.CostEstimate(
        flops=B * S * H,
        transcendentals=0,
        bytes_accessed=(2 * B * S * H + B * H) * itemsize,
    )

    out = pl.pallas_call(
        _spatial_dropout_kernel,
        out_shape=jax.ShapeDtypeStruct(x_k.shape, x.dtype),
        grid=grid,
        in_specs=[
            pl.BlockSpec((bB, TS, Hp), lambda b, s: (b, s, 0)),
            pl.BlockSpec((bB, 1, Hp), lambda b, s: (b, 0, 0)),
        ],
        out_specs=pl.BlockSpec((bB, TS, Hp), lambda b, s: (b, s, 0)),
        compiler_params=pltpu.CompilerParams(
            # Every grid step is independent (mask is a plain input, no
            # stateful PRNG), so both axes can shard across v7x's two TCs.
            dimension_semantics=("parallel", "parallel"),
            vmem_limit_bytes=vmem_limit,
        ),
        cost_estimate=cost,
    )(x_k, noise_k)

    if Hp != H:
        out = out[:, :, :H]
    return out


if __name__ == "__main__":
    key = jax.random.PRNGKey(0)
    B, S, H = 2, 128, 128          # S == H required by the module's semantics
    x = jax.random.normal(key, (B, S, H), dtype=jnp.float32)

    drop_prob = 0.3
    # Force the Pallas path so the kernel itself is exercised at this shape.
    out = jax.block_until_ready(
        spatial_dropout(x, drop_prob, seed=1234, training=True, force_pallas=True))

    # --- sanity checks -------------------------------------------------------
    scale = 1.0 / (1.0 - drop_prob)
    ratio = out / x                                   # x has (a.s.) no zeros
    is_dropped = jnp.isclose(ratio, 0.0, atol=1e-5)
    is_kept = jnp.isclose(ratio, scale, rtol=1e-5)
    assert bool(jnp.all(is_dropped | is_kept)), "values must be 0 or x/(1-p)"

    # mask must be identical across the seq axis (spatial dropout property)
    col_dropped = is_dropped[:, 0, :]                 # (B, H)
    assert bool(jnp.all(is_dropped == col_dropped[:, None, :])), (
        "mask must be shared across the seq axis"
    )

    # auto path (small-input fast path at this shape) matches the kernel
    out_auto = jax.block_until_ready(
        spatial_dropout(x, drop_prob, seed=1234, training=True))
    assert bool(jnp.all(out_auto == out))

    # eval mode / p == 0 return the input unchanged
    out_eval = spatial_dropout(x, drop_prob, seed=1234, training=False)
    assert bool(jnp.all(out_eval == x))
    out_p0 = spatial_dropout(x, 0.0, seed=1234, training=True)
    assert bool(jnp.all(out_p0 == x))
    # p == 1 zeroes everything
    out_p1 = jax.block_until_ready(spatial_dropout(x, 1.0, seed=1234, training=True))
    assert bool(jnp.all(out_p1 == 0))

    print("KERNEL_OK")
</pallas_src>

<mosaic_0001>
module attributes {stable_mosaic.version = 11 : i64} {
  func.func @_spatial_dropout_kernel(%arg0: i32, %arg1: i32, %arg2: memref<1x128x128xf32, #tpu.memory_space<vmem>>, %arg3: memref<1x1x128xf32, #tpu.memory_space<vmem>>, %arg4: memref<1x128x128xf32, #tpu.memory_space<vmem>>) attributes {dimension_semantics = [#tpu.dimension_semantics<parallel>, #tpu.dimension_semantics<parallel>], iteration_bounds = array<i64: 2, 1>, scalar_prefetch = 0 : i64, scratch_operands = 0 : i64, tpu.core_type = #tpu.core_type<tc>, window_params = [{transform_indices = @transform_0, window_bounds = array<i64: 1, 128, 128>}, {transform_indices = @transform_1, window_bounds = array<i64: 1, 1, 128>}, {transform_indices = @transform_2, window_bounds = array<i64: 1, 128, 128>}]} {
    %c0 = arith.constant 0 : index
    %c0_0 = arith.constant 0 : index
    %c0_1 = arith.constant 0 : index
    %0 = vector.load %arg2[%c0, %c0_0, %c0_1] : memref<1x128x128xf32, #tpu.memory_space<vmem>>, vector<1x128x128xf32>
    %c0_2 = arith.constant 0 : index
    %c0_3 = arith.constant 0 : index
    %c0_4 = arith.constant 0 : index
    %1 = vector.load %arg3[%c0_2, %c0_3, %c0_4] : memref<1x1x128xf32, #tpu.memory_space<vmem>>, vector<1x1x128xf32>
    %2 = vector.broadcast %1 : vector<1x1x128xf32> to vector<1x128x128xf32>
    %3 = arith.mulf %0, %2 : vector<1x128x128xf32>
    %c0_5 = arith.constant 0 : index
    %c0_6 = arith.constant 0 : index
    %c0_7 = arith.constant 0 : index
    %4 = vector.load %arg4[%c0_5, %c0_6, %c0_7] : memref<1x128x128xf32, #tpu.memory_space<vmem>>, vector<1x128x128xf32>
    tpu.vector_store %arg4[%c0_5, %c0_6, %c0_7], %3 {strides = array<i32>} : memref<1x128x128xf32, #tpu.memory_space<vmem>>, vector<1x128x128xf32>,
    return
  }
  func.func @transform_0(%arg0: i32, %arg1: i32) -> (i32, i32, i32) {
    %c0_i32 = arith.constant 0 : i32
    %c0_i32_0 = arith.constant 0 : i32
    return %arg0, %arg1, %c0_i32 : i32, i32, i32
  }
  func.func @transform_1(%arg0: i32, %arg1: i32) -> (i32, i32, i32) {
    %c0_i32 = arith.constant 0 : i32
    %c0_i32_0 = arith.constant 0 : i32
    %c0_i32_1 = arith.constant 0 : i32
    return %arg0, %c0_i32, %c0_i32_0 : i32, i32, i32
  }
  func.func @transform_2(%arg0: i32, %arg1: i32) -> (i32, i32, i32) {
    %c0_i32 = arith.constant 0 : i32
    %c0_i32_0 = arith.constant 0 : i32
    return %arg0, %arg1, %c0_i32 : i32, i32, i32
  }
}

</mosaic_0001>

<llo_original>
// kernel: tpu_custom_call.1
$region0: #{tpu_custom_call.1}
  #allocation0 [shape = 'u32[]', space=smem, size = 0x4, offset = 0x4, fixed_abs, tag = 'smem constant byte address 0x4 - core index']
  #allocation1 [shape = 'u32[72,128]{1,0:T(1,128)}', space=vmem, size = 0x9000, scoped, tag = 'internal scratch']
  %s0 = inlined_call_operand.hbm [shape: f32[2,128,128], index: 0, kind: input, shape index: {}]
  %s1 = inlined_call_operand.hbm [shape: f32[2,1,128], index: 1, kind: input, shape index: {}]
  %s2 = inlined_call_operand.hbm [shape: f32[2,128,128], index: 2, kind: output, shape index: {}]
  %s3 = sld [smem:[#allocation0]]
  $region49: #{tpu_custom_call.1} parent=0
    _
  %s5 = ssub.s32 1, %s3
  %s6 = scalar_select 0, %s5, %s3
  $region1: #{tpu_custom_call.1} parent=0
    #allocation2 [shape = 'u8[131072]{0}', space=vmem, size = 0x20000, scoped, tag = 'input window, operand 0']
    #allocation3 [shape = 's32[2]{0}', space=sflag, size = 0x8, scoped, tag = 'scoped memory for tpu_custom_call.1']
    #allocation4 [shape = 's32[2]{0}', space=sflag, size = 0x8, scoped, tag = 'scoped memory for tpu_custom_call.1']
    #allocation5 [shape = 'u8[1024]{0}', space=vmem, size = 0x400, scoped, tag = 'input window, operand 1']
    #allocation6 [shape = 's32[2]{0}', space=sflag, size = 0x8, scoped, tag = 'scoped memory for tpu_custom_call.1']
    #allocation7 [shape = 'u8[131072]{0}', space=vmem, size = 0x20000, scoped, tag = 'output window, operand 0']
    %7 = vsyncpa [#allocation3], 0
    %s8 = scalar_lea.sflag [#allocation3], 1
    %9 = vsyncpa %s8, 0
    %10 = vsyncpa [#allocation6], 0
    %s11 = scalar_lea.sflag [#allocation6], 1
    %12 = vsyncpa %s11, 0
    %13 = vsyncpa [#allocation4], 0
    %s14 = scalar_lea.sflag [#allocation4], 1
    %15 = vsyncpa %s14, 0
    loop: start=0, step=1, limit=4
    $region2: #{tpu_custom_call.1} parent=1 // loop_pre_header
      _
    $region3: #{tpu_custom_call.1} parent=1 // loop_header
      %s17 = sphi 0, %s21
      %p18 = scmp.ge.s32.totalorder %s17, 4
      %s24 = sphi 0, %s36
      %s25 = sphi 0, %s32
      %s26 = sphi 0, %s24
      %s27 = sphi 0, %s25
      %s28 = sphi 0, %s26
      %s29 = sphi 0, %s27
      %s41 = sphi 0, %s43
      %s44 = sphi 0, %s41
      %s45 = sphi 0, %s44
      %s61 = sphi 0, %s45
      %s67 = sphi 0, %s69
      %s70 = sphi 0, %s67
      %s71 = sphi 0, %s70
      %s87 = sphi 0, %s71
      %s95 = sphi 0, %s97
      %s98 = sphi 0, %s95
      %s99 = sphi 0, %s98
      %s115 = sphi 0, %s99
    $region4: #{tpu_custom_call.1} parent=1 // loop_header_branch
      %20 = sbr.rel (%p18) target = $region8
    $region5: #{tpu_custom_call.1} parent=1 // loop_body
      %s22 = ssub.s32 %s17, 1
      %s23 = ssub.s32 %s17, 2
      %s30 = sadd.s32 1, %s25
      %p31 = scmp.ge.s32.totalorder %s30, 1
      %s32 = scalar_select %p31, 0, %s30
      %s33 = sadd.s32 1, %s24
      %s34 = scalar_select %p31, %s33, %s24
      %p35 = scmp.ge.s32.totalorder %s34, 2
      %s36 = scalar_select %p35, 0, %s34
      %s37 = ssub.s32 %s24, %s36
      %s38 = ssub.s32 %s25, %s32
      %s39 = sor.u32 %s37, %s38
      %p40 = scmp.eq.s32.totalorder %s39, 0
      %s42 = sadd.s32 %s41, 1
      %s43 = scalar_select %p40, %s41, %s42
      %p46 = pneg %p40
      %p47 = scmp.eq.s32.totalorder %s17, 1
      %p48 = por %p46, %p47
      %p49 = scmp.ne.s32.totalorder %s41, %s44
      %p50 = scmp.eq.s32.totalorder %s17, 0
      %p51 = por %p49, %p50
      %p52 = scmp.ne.s32.totalorder %s41, %s44
      %p53 = scmp.eq.s32.totalorder %s22, 1
      %p54 = por %p52, %p53
      %p55 = scmp.ne.s32.totalorder %s44, %s45
      %p56 = scmp.eq.s32.totalorder %s22, 0
      %p57 = por %p55, %p56
      %p58 = scmp.ne.s32.totalorder %s44, %s45
      %p59 = scmp.eq.s32.totalorder %s23, 1
      %p60 = por %p58, %p59
      %p62 = scmp.ne.s32.totalorder %s45, %s61
      %p63 = scmp.eq.s32.totalorder %s23, 0
      %p64 = por %p62, %p63
      %s65 = ssub.s32 %s24, %s36
      %p66 = scmp.eq.s32.totalorder %s65, 0
      %s68 = sadd.s32 %s67, 1
      %s69 = scalar_select %p66, %s67, %s68
      %p72 = pneg %p66
      %p73 = scmp.eq.s32.totalorder %s17, 1
      %p74 = por %p72, %p73
      %p75 = scmp.ne.s32.totalorder %s67, %s70
      %p76 = scmp.eq.s32.totalorder %s17, 0
      %p77 = por %p75, %p76
      %p78 = scmp.ne.s32.totalorder %s67, %s70
      %p79 = scmp.eq.s32.totalorder %s22, 1
      %p80 = por %p78, %p79
      %p81 = scmp.ne.s32.totalorder %s70, %s71
      %p82 = scmp.eq.s32.totalorder %s22, 0
      %p83 = por %p81, %p82
      %p84 = scmp.ne.s32.totalorder %s70, %s71
      %p85 = scmp.eq.s32.totalorder %s23, 1
      %p86 = por %p84, %p85
      %p88 = scmp.ne.s32.totalorder %s71, %s87
      %p89 = scmp.eq.s32.totalorder %s23, 0
      %p90 = por %p88, %p89
      %s91 = ssub.s32 %s24, %s36
      %s92 = ssub.s32 %s25, %s32
      %s93 = sor.u32 %s91, %s92
      %p94 = scmp.eq.s32.totalorder %s93, 0
      %s96 = sadd.s32 %s95, 1
      %s97 = scalar_select %p94, %s95, %s96
      %p100 = pneg %p94
      %p101 = scmp.eq.s32.totalorder %s17, 1
      %p102 = por %p100, %p101
      %p103 = scmp.ne.s32.totalorder %s95, %s98
      %p104 = scmp.eq.s32.totalorder %s17, 0
      %p105 = por %p103, %p104
      %p106 = scmp.ne.s32.totalorder %s95, %s98
      %p107 = scmp.eq.s32.totalorder %s22, 1
      %p108 = por %p106, %p107
      %p109 = scmp.ne.s32.totalorder %s98, %s99
      %p110 = scmp.eq.s32.totalorder %s22, 0
      %p111 = por %p109, %p110
      %p112 = scmp.ne.s32.totalorder %s98, %s99
      %p113 = scmp.eq.s32.totalorder %s23, 1
      %p114 = por %p112, %p113
      %p116 = scmp.ne.s32.totalorder %s99, %s115
      %p117 = scmp.eq.s32.totalorder %s23, 0
      %p118 = por %p116, %p117
      %p119 = scmp.le.s32.totalorder 1, %s17
      %p120 = scmp.lt.s32.totalorder %s17, 3
      %p121 = pnand %p119, %p120
      %p122 = pneg %p121
      // Predicated region
      $region9: #{tpu_custom_call.1} parent=5 // pred_check
        _
      $region10: #{tpu_custom_call.1} parent=5 // pred_check_branch
        %124 = sbr.rel (%p121) target = $region12
      $region11: #{tpu_custom_call.1} parent=5 // pred_region
        %s125 = ssub.s32 %s17, 1
      $region12: #{tpu_custom_call.1} parent=5 // pred_fallthru
        _
      %p126 = scmp.lt.s32.totalorder %s17, 2
      // Predicated region
      $region13: #{tpu_custom_call.1} parent=5 // pred_check
        %p127 = pneg %p126
      $region14: #{tpu_custom_call.1} parent=5 // pred_check_branch
        %129 = sbr.rel (%p127) target = $region16
      $region15: #{tpu_custom_call.1} parent=5 // pred_region
        // Predicated region
        $region17: #{tpu_custom_call.1} parent=15 // pred_check
          %p130 = pneg %p51
        $region18: #{tpu_custom_call.1} parent=15 // pred_check_branch
          %132 = sbr.rel (%p130) target = $region20
        $region19: #{tpu_custom_call.1} parent=15 // pred_region
          %s133 = sand.u32 %s41, 1
          %s134 = scalar_lea.sflag [#allocation3], %s133
          %s135 = sand.u32 %s41, 1
          %s136 = smul.addr %s135, 128
          %s137 = scalar_lea.vmem [#allocation2], %s136
          %s138 = smul.u32 16, %s25
          %140 = vsyncadd %s134, 0
          %s141 = smul.addr %s24, 16
          %s142 = sadd.s32 %s138, %s141
          %s143 = smul.addr %s142, 8
          %s144 = scalar_lea.hbm %s0, %s143
          %s145 = sshll.u32 %s144, 4
          %s146 = int_to_ptr.hbm [resolvable:$true] %s145
          %s147 = sshll.u32 %s137, 4
          %s148 = int_to_ptr.vmem [resolvable:$true] %s147
          %153 = dma.hbm_to_vmem [thread:$0]  %s146, 2048, %s148, %s134, 128, 128, 8
        $region20: #{tpu_custom_call.1} parent=15 // pred_fallthru
          _
        // Predicated region
        $region21: #{tpu_custom_call.1} parent=15 // pred_check
          %p154 = pneg %p77
        $region22: #{tpu_custom_call.1} parent=15 // pred_check_branch
          %156 = sbr.rel (%p154) target = $region24
        $region23: #{tpu_custom_call.1} parent=15 // pred_region
          %s157 = sand.u32 %s67, 1
          %s158 = scalar_lea.sflag [#allocation6], %s157
          %s159 = sand.u32 %s67, 1
          %s160 = scalar_lea.vmem [#allocation5], %s159
          %162 = vsyncadd %s158, 0
          %s163 = scalar_lea.hbm %s1, %s24
          %s165 = sshll.u32 %s163, 4
          %s166 = int_to_ptr.hbm [resolvable:$true] %s165
          %s167 = sshll.u32 %s160, 4
          %s168 = int_to_ptr.vmem [resolvable:$true] %s167
          %170 = dma.hbm_to_vmem [thread:$0]  %s166, 16, %s168, %s158
        $region24: #{tpu_custom_call.1} parent=15 // pred_fallthru
          _
      $region16: #{tpu_custom_call.1} parent=5 // pred_fallthru
        _
      %p171 = scmp.le.s32.totalorder 1, %s17
      %p172 = scmp.lt.s32.totalorder %s17, 3
      %p173 = pnand %p171, %p172
      %p174 = pneg %p173
      // Predicated region
      $region25: #{tpu_custom_call.1} parent=5 // pred_check
        _
      $region26: #{tpu_custom_call.1} parent=5 // pred_check_branch
        %176 = sbr.rel (%p173) target = $region28
      $region27: #{tpu_custom_call.1} parent=5 // pred_region
        %s177 = ssub.s32 %s17, 1
        %s178 = sand.u32 %s44, 1
        %s179 = scalar_lea.sflag [#allocation3], %s178
        %s180 = sand.u32 %s44, 1
        %s181 = smul.addr %s180, 128
        %s182 = scalar_lea.vmem [#allocation2], %s181
        // Predicated region
        $region29: #{tpu_custom_call.1} parent=27 // pred_check
          %p183 = pneg %p57
        $region30: #{tpu_custom_call.1} parent=27 // pred_check_branch
          %185 = sbr.rel (%p183) target = $region32
        $region31: #{tpu_custom_call.1} parent=27 // pred_region
          %187 = dma.done %s179, 2048
        $region32: #{tpu_custom_call.1} parent=27 // pred_fallthru
          _
        %s188 = sand.u32 %s70, 1
        %s189 = scalar_lea.sflag [#allocation6], %s188
        %s190 = sand.u32 %s70, 1
        %s191 = scalar_lea.vmem [#allocation5], %s190
        // Predicated region
        $region33: #{tpu_custom_call.1} parent=27 // pred_check
          %p192 = pneg %p83
        $region34: #{tpu_custom_call.1} parent=27 // pred_check_branch
          %194 = sbr.rel (%p192) target = $region36
        $region35: #{tpu_custom_call.1} parent=27 // pred_region
          %196 = dma.done %s189, 16
        $region36: #{tpu_custom_call.1} parent=27 // pred_fallthru
          _
        %s197 = sand.u32 %s44, 1
        %s198 = scalar_lea.sflag [#allocation3], %s197
        %s199 = sand.u32 %s44, 1
        %s200 = smul.addr %s199, 128
        %s201 = scalar_lea.vmem [#allocation2], %s200
        %p202 = pneg %p57
        %p203 = pneg %p54
        %s204 = sand.u32 %s70, 1
        %s205 = scalar_lea.sflag [#allocation6], %s204
        %s206 = sand.u32 %s70, 1
        %s207 = scalar_lea.vmem [#allocation5], %s206
        %p208 = pneg %p83
        %p209 = pneg %p80
        %p210 = pneg %p111
        %p211 = pneg %p108
        %s212 = sand.u32 %s98, 1
        %s213 = scalar_lea.sflag [#allocation4], %s212
        %s214 = sand.u32 %s98, 1
        %s215 = smul.addr %s214, 128
        %s216 = scalar_lea.vmem [#allocation7], %s215
        %s217 = smul.u32 16, %s27
        %s218 = smul.u32 16, %s27
        %v219 = vld [vmem:[%s182] sm:$0xff]
        %v220 = vld [vmem:[%s182 + $0x8] sm:$0xff]
        %v221 = vld [vmem:[%s182 + $0x10] sm:$0xff]
        %v222 = vld [vmem:[%s182 + $0x18] sm:$0xff]
        %v223 = vld [vmem:[%s182 + $0x20] sm:$0xff]
        %v224 = vld [vmem:[%s182 + $0x28] sm:$0xff]
        %v225 = vld [vmem:[%s182 + $0x30] sm:$0xff]
        %v226 = vld [vmem:[%s182 + $0x38] sm:$0xff]
        %v227 = vld [vmem:[%s182 + $0x40] sm:$0xff]
        %v228 = vld [vmem:[%s182 + $0x48] sm:$0xff]
        %v229 = vld [vmem:[%s182 + $0x50] sm:$0xff]
        %v230 = vld [vmem:[%s182 + $0x58] sm:$0xff]
        %v231 = vld [vmem:[%s182 + $0x60] sm:$0xff]
        %v232 = vld [vmem:[%s182 + $0x68] sm:$0xff]
        %v233 = vld [vmem:[%s182 + $0x70] sm:$0xff]
        %v234 = vld [vmem:[%s182 + $0x78] sm:$0xff]
        %v235 = vld [vmem:[%s191] sm:$0x1]
        %v237 = vperm.slane %v235, 0
        %v239 = vmul.f32 %v219, %v237
        %v240 = vmul.f32 %v220, %v237
        %v241 = vmul.f32 %v221, %v237
        %v242 = vmul.f32 %v222, %v237
        %v243 = vmul.f32 %v223, %v237
        %v244 = vmul.f32 %v224, %v237
        %v245 = vmul.f32 %v225, %v237
        %v246 = vmul.f32 %v226, %v237
        %v247 = vmul.f32 %v227, %v237
        %v248 = vmul.f32 %v228, %v237
        %v249 = vmul.f32 %v229, %v237
        %v250 = vmul.f32 %v230, %v237
        %v251 = vmul.f32 %v231, %v237
        %v252 = vmul.f32 %v232, %v237
        %v253 = vmul.f32 %v233, %v237
        %v254 = vmul.f32 %v234, %v237
        %255 = vst [vmem:[%s216] sm:$0xff] %v239
        %256 = vst [vmem:[%s216 + $0x8] sm:$0xff] %v240
        %257 = vst [vmem:[%s216 + $0x10] sm:$0xff] %v241
        %258 = vst [vmem:[%s216 + $0x18] sm:$0xff] %v242
        %259 = vst [vmem:[%s216 + $0x20] sm:$0xff] %v243
        %260 = vst [vmem:[%s216 + $0x28] sm:$0xff] %v244
        %261 = vst [vmem:[%s216 + $0x30] sm:$0xff] %v245
        %262 = vst [vmem:[%s216 + $0x38] sm:$0xff] %v246
        %263 = vst [vmem:[%s216 + $0x40] sm:$0xff] %v247
        %264 = vst [vmem:[%s216 + $0x48] sm:$0xff] %v248
        %265 = vst [vmem:[%s216 + $0x50] sm:$0xff] %v249
        %266 = vst [vmem:[%s216 + $0x58] sm:$0xff] %v250
        %267 = vst [vmem:[%s216 + $0x60] sm:$0xff] %v251
        %268 = vst [vmem:[%s216 + $0x68] sm:$0xff] %v252
        %269 = vst [vmem:[%s216 + $0x70] sm:$0xff] %v253
        %270 = vst [vmem:[%s216 + $0x78] sm:$0xff] %v254
        %s271 = sand.u32 %s98, 1
        %s272 = scalar_lea.sflag [#allocation4], %s271
        %s273 = sand.u32 %s98, 1
        %s274 = smul.addr %s273, 128
        %s275 = scalar_lea.vmem [#allocation7], %s274
        // Predicated region
        $region37: #{tpu_custom_call.1} parent=27 // pred_check
          %p276 = pneg %p108
        $region38: #{tpu_custom_call.1} parent=27 // pred_check_branch
          %278 = sbr.rel (%p276) target = $region40
        $region39: #{tpu_custom_call.1} parent=27 // pred_region
          %s279 = smul.u32 16, %s27
          %281 = vsyncadd %s272, 0
          %s282 = smul.addr %s26, 16
          %s283 = sadd.s32 %s279, %s282
          %s284 = smul.addr %s283, 8
          %s285 = scalar_lea.hbm %s2, %s284
          %s286 = sshll.u32 %s275, 4
          %s287 = int_to_ptr.vmem [resolvable:$true] %s286
          %s288 = sshll.u32 %s285, 4
          %s289 = int_to_ptr.hbm [resolvable:$true] %s288
          %294 = dma.vmem_to_hbm [thread:$0]  %s287, 2048, %s289, %s272, 128, 128, 8
        $region40: #{tpu_custom_call.1} parent=27 // pred_fallthru
          _
      $region28: #{tpu_custom_call.1} parent=5 // pred_fallthru
        _
      %p295 = scmp.le.s32.totalorder 2, %s17
      // Predicated region
      $region41: #{tpu_custom_call.1} parent=5 // pred_check
        %p296 = pneg %p295
      $region42: #{tpu_custom_call.1} parent=5 // pred_check_branch
        %298 = sbr.rel (%p296) target = $region44
      $region43: #{tpu_custom_call.1} parent=5 // pred_region
        %s299 = ssub.s32 %s17, 2
        // Predicated region
        $region45: #{tpu_custom_call.1} parent=43 // pred_check
          %p300 = pneg %p114
        $region46: #{tpu_custom_call.1} parent=43 // pred_check_branch
          %302 = sbr.rel (%p300) target = $region48
        $region47: #{tpu_custom_call.1} parent=43 // pred_region
          %s303 = sand.u32 %s99, 1
          %s304 = scalar_lea.sflag [#allocation4], %s303
          %s305 = sand.u32 %s99, 1
          %s306 = smul.addr %s305, 128
          %s307 = scalar_lea.vmem [#allocation7], %s306
          %309 = dma.done %s304, 2048
        $region48: #{tpu_custom_call.1} parent=43 // pred_fallthru
          _
      $region44: #{tpu_custom_call.1} parent=5 // pred_fallthru
        _
    $region6: #{tpu_custom_call.1} parent=1 // loop_footer
      %s21 = sadd.s32 1, %s17
    $region7: #{tpu_custom_call.1} parent=1 // loop_footer_branch
      %16 = sbr.rel target = $region3
    $region8: #{tpu_custom_call.1} parent=1 // loop_exit
      _
    %310 = vsyncpa [#allocation3], 1
    %s311 = scalar_lea.sflag [#allocation3], 1
    %312 = vsyncpa %s311, 1
    %313 = vsyncpa [#allocation6], 1
    %s314 = scalar_lea.sflag [#allocation6], 1
    %315 = vsyncpa %s314, 1
    %316 = vsyncpa [#allocation4], 1
    %s317 = scalar_lea.sflag [#allocation4], 1
    %318 = vsyncpa %s317, 1

</llo_original>
